<compile_context>
chip_gen: v7x
topology: tpu7x:2x2x1
jax: 0.10.0
libtpu: 0.0.40
codegen_flags: <defaults>
</compile_context>

<pallas_src>
import functools

import jax
import jax.numpy as jnp
from jax import lax
from jax.experimental import pallas as pl
from jax.experimental.pallas import tpu as pltpu


def _round_up(v, m):
    return (v + m - 1) // m * m


def frequency_weighting_kernel(x_ref, g_ref, out_ref, *, inverse: bool, polar: bool):
    """One (tb, L) row-block of interleaved (re, im) lanes.

    g_ref carries, duplicated on both lanes of each (h, w) pair:
      - gauss^2  for the non-polar inverse path
      - gauss    for the non-polar forward path and for both polar paths
    """
    x = x_ref[...]                       # (tb, L) interleaved re/im
    g = g_ref[...]                       # (1,  L)
    L = x.shape[-1]

    lane = lax.broadcasted_iota(jnp.int32, (1, L), 1)
    is_even = (lane & 1) == 0            # real lanes

    if not polar:
        sq = x * x
        # Partner (in-pair neighbour) square via two lane rotations; the partner of
        # lane i is lane i^1.  We roll by +1 and by L-1 and pick, per lane, whichever
        # rotation delivered lane i^1 (checked on a tiny (1, L) lane iota rolled the
        # same way).  The probe keeps this correct regardless of pltpu.roll's
        # direction convention; its extra cost is one (1, L) roll + compare, i.e.
        # negligible next to the two unavoidable (tb, L) data rolls, and the XLU
        # slot is idle in this HBM-bound kernel anyway.
        r_a = pltpu.roll(sq, shift=1, axis=1)
        r_b = pltpu.roll(sq, shift=L - 1, axis=1)
        lane_a = pltpu.roll(lane, shift=1, axis=1)
        use_a = lane_a == (lane ^ 1)
        partner_sq = jnp.where(use_a, r_a, r_b)
        magsq = sq + partner_sq                          # |z|^2 on both lanes of a pair

        # Spatial max: pair values are duplicated and all lanes are real data (no
        # lane padding), so a plain row max is the per-(n, c) max |z|^2.
        ampsq = jnp.max(magsq, axis=1, keepdims=True)    # (tb, 1)
        magsq_safe = jnp.where(magsq > 0.0, magsq, 1.0)  # no inf*0 NaNs at exact zeros

        if inverse:
            # out = x / (|z| * amp * gauss);  g carries gauss^2 -> single EUP rsqrt,
            # no divides, no (tb,1) sqrt, one fewer full-width multiply.
            s = lax.rsqrt(magsq_safe * (ampsq * g))
        else:
            # out = x * (amp * gauss) / |z|
            amp = jnp.sqrt(ampsq)                        # (tb, 1) sqrt only
            s = (amp * g) * lax.rsqrt(magsq_safe)

        out = x * s
        # Exact-zero pairs: torch computes phase = atan2(0, 0) = 0 and outputs
        # (w, 0).  At those pairs magsq_safe == 1, so s already equals w; the odd
        # (imag) lane keeps x*s == 0.
        out = jnp.where(jnp.logical_and(magsq == 0.0, is_even), s, out)
        out_ref[...] = out
    else:
        # polar path: even lanes carry magnitude, odd lanes carry phase (pass-through).
        mag_lanes = jnp.where(is_even, x, -jnp.inf)
        amp = jnp.max(mag_lanes, axis=1, keepdims=True)  # (tb, 1)
        base = amp * g
        w = pl.reciprocal(base, approx=True) if inverse else base   # EUP, not a VPU divide
        out_ref[...] = jnp.where(is_even, w, x)


def make_gauss_2d(H, W, center=(0, 0), sigma=(1, 1), dtype=jnp.float32):
    # Same formula as the module's __init__ (grid = centered frequency meshgrid).
    ky = jnp.arange(H, dtype=dtype) - H // 2
    kx = jnp.arange(W, dtype=dtype) - W // 2
    gy, gx = jnp.meshgrid(ky, kx, indexing="ij")
    return jnp.exp(-((gy - center[0]) / 2 * sigma[0] ** 2 +
                     (gx - center[1]) / 2 * sigma[1] ** 2))


def _tpu_budget():
    """(vmem_limit_bytes, target_block_bytes) sized per TPU generation."""
    try:
        cap = int(pltpu.get_tpu_info().vmem_capacity_bytes)
    except Exception:
        cap = 64 << 20                      # conservative fallback = v7x per-TC VMEM
    if cap >= (100 << 20):                  # v5e / v6e: 128 MiB physical VMEM per TC
        return 96 << 20, 8 << 20
    return 48 << 20, 4 << 20                # v7x: 64 MiB per TC, working set ~6-7x block


def frequency_weighting(x, gauss_2d, *, inverse=True, polar=False, row_block=None):
    """x: (N, C, H, W, 2) float32. Returns same shape."""
    N, C, H, W, two = x.shape
    assert two == 2
    B, HW = N * C, H * W
    L = 2 * HW

    # Free, contiguous reshape: rows = (n, c); lanes = (h, w, re/im) interleaved.
    x_int = x.reshape(B, L)

    g_pair = jnp.repeat(gauss_2d.astype(x.dtype).reshape(HW), 2).reshape(1, L)
    if (not polar) and inverse:
        g_row = g_pair * g_pair            # kernel consumes gauss^2 on this path
    else:
        g_row = g_pair

    vmem_limit, target_block_bytes = _tpu_budget()

    if row_block is None:
        # ~4 MiB (v7x) / ~8 MiB (v5e/v6e) blocks amortize the ~0.35 us per-step
        # pipeline overhead; also cap so the grid has >=4 steps when possible so the
        # "parallel" axis can shard across v7x's two TensorCores.
        rows_from_bytes = max(8, (target_block_bytes // (L * x.dtype.itemsize)) // 8 * 8)
        rows_for_cores = max(8, _round_up(pl.cdiv(B, 4), 8))
        row_block = min(rows_from_bytes, rows_for_cores)
    # TODO(synk): for very large H*W (a single 8-row block exceeding the VMEM budget,
    # especially v7x's 64 MiB) the spatial max needs a lane-tiled two-phase reduction;
    # this version keeps a full row per block.

    if row_block >= B:
        tb = B                             # one block; full-dim rows are always legal
    else:
        tb = max(8, (row_block // 8) * 8)  # multiple of 8; ragged last block is fine
        if tb >= B:
            tb = B
    grid = (pl.cdiv(B, tb),)

    kernel = functools.partial(frequency_weighting_kernel, inverse=inverse, polar=polar)

    out_int = pl.pallas_call(
        kernel,
        out_shape=jax.ShapeDtypeStruct((B, L), x.dtype),
        grid=grid,
        in_specs=[pl.BlockSpec((tb, L), lambda i: (i, 0)),
                  pl.BlockSpec((1, L), lambda i: (0, 0))],
        out_specs=pl.BlockSpec((tb, L), lambda i: (i, 0)),
        compiler_params=pltpu.CompilerParams(
            dimension_semantics=("parallel",),
            vmem_limit_bytes=vmem_limit),
    )(x_int, g_row)

    return out_int.reshape(N, C, H, W, 2)


def _reference(x, gauss_2d, inverse=True):
    # Matches the torch module's math.  polarToCylindrical(w, atan2(im, re)) is
    # written in its algebraically identical form (w*re/|z|, w*im/|z|): the trig
    # round-trip has ~1e-7 *absolute* error in cos/sin near axis-aligned phases,
    # which multiplied by gauss weights up to ~3e3 swamps a tight relative tolerance
    # (that was the cause of the previous forward-path "mismatch").
    re, im = x[..., 0], x[..., 1]
    mag = jnp.sqrt(re * re + im * im)
    amp = jnp.max(mag.reshape(x.shape[0], x.shape[1], -1), axis=2)[..., None, None]
    w = 1.0 / (amp * gauss_2d) if inverse else amp * gauss_2d
    return jnp.stack([w * re / mag, w * im / mag], axis=-1)


if __name__ == "__main__":
    key = jax.random.PRNGKey(0)

    # Primary test: module-sized input, inverse weighting (default path), grid=(1,).
    N, C, H, W = 2, 4, 16, 16
    x = jax.random.normal(key, (N, C, H, W, 2), dtype=jnp.float32)
    gauss_2d = make_gauss_2d(H, W, center=(0, 0), sigma=(1, 1))

    out = frequency_weighting(x, gauss_2d, inverse=True, polar=False)
    out = jax.block_until_ready(out)
    ref = _reference(x, gauss_2d, inverse=True)
    assert out.shape == (N, C, H, W, 2)
    assert jnp.allclose(out, ref, rtol=2e-5, atol=1e-5), "mismatch vs JAX reference (inverse)"

    # Secondary test: B % tb != 0 (ragged last row-block, no padding), multi-step
    # grid, forward path.
    N2, C2 = 3, 5
    x2 = jax.random.normal(jax.random.PRNGKey(1), (N2, C2, H, W, 2), dtype=jnp.float32)
    out2 = frequency_weighting(x2, gauss_2d, inverse=False, polar=False, row_block=8)
    out2 = jax.block_until_ready(out2)
    ref2 = _reference(x2, gauss_2d, inverse=False)
    assert jnp.allclose(out2, ref2, rtol=2e-5, atol=1e-5), "mismatch vs JAX reference (forward)"

    print("KERNEL_OK")
</pallas_src>

<mosaic_0001>
module attributes {stable_mosaic.version = 11 : i64} {
  func.func @frequency_weighting_kernel(%arg0: i32, %arg1: memref<8x512xf32, #tpu.memory_space<vmem>>, %arg2: memref<1x512xf32, #tpu.memory_space<vmem>>, %arg3: memref<8x512xf32, #tpu.memory_space<vmem>>) attributes {dimension_semantics = [#tpu.dimension_semantics<parallel>], iteration_bounds = array<i64: 1>, scalar_prefetch = 0 : i64, scratch_operands = 0 : i64, tpu.core_type = #tpu.core_type<tc>, window_params = [{transform_indices = @transform_0, window_bounds = array<i64: 8, 512>}, {pipeline_mode = #tpu.pipeline_mode<synchronous>, transform_indices = @transform_1, window_bounds = array<i64: 1, 512>}, {transform_indices = @transform_2, window_bounds = array<i64: 8, 512>}]} {
    %c0 = arith.constant 0 : index
    %c0_0 = arith.constant 0 : index
    %0 = vector.load %arg1[%c0, %c0_0] : memref<8x512xf32, #tpu.memory_space<vmem>>, vector<8x512xf32>
    %c0_1 = arith.constant 0 : index
    %c0_2 = arith.constant 0 : index
    %1 = vector.load %arg2[%c0_1, %c0_2] : memref<1x512xf32, #tpu.memory_space<vmem>>, vector<1x512xf32>
    %2 = tpu.iota {dimensions = array<i32: 1>} : vector<1x512xi32>
    %c1_i32 = arith.constant 1 : i32
    %3 = vector.broadcast %c1_i32 : i32 to vector<1x512xi32>
    %4 = arith.andi %2, %3 : vector<1x512xi32>
    %c0_i32 = arith.constant 0 : i32
    %5 = vector.broadcast %c0_i32 : i32 to vector<1x512xi32>
    %6 = arith.cmpi eq, %4, %5 : vector<1x512xi32>
    %7 = arith.mulf %0, %0 : vector<8x512xf32>
    %c1_i32_3 = arith.constant 1 : i32
    %8 = tpu.dynamic_rotate %7 by %c1_i32_3 dim 1 : vector<8x512xf32>, i32 -> vector<8x512xf32>
    %c511_i32 = arith.constant 511 : i32
    %9 = tpu.dynamic_rotate %7 by %c511_i32 dim 1 : vector<8x512xf32>, i32 -> vector<8x512xf32>
    %c1_i32_4 = arith.constant 1 : i32
    %10 = tpu.dynamic_rotate %2 by %c1_i32_4 dim 1 : vector<1x512xi32>, i32 -> vector<1x512xi32>
    %c1_i32_5 = arith.constant 1 : i32
    %11 = vector.broadcast %c1_i32_5 : i32 to vector<1x512xi32>
    %12 = arith.xori %2, %11 : vector<1x512xi32>
    %13 = arith.cmpi eq, %10, %12 : vector<1x512xi32>
    %14 = vector.shape_cast %13 : vector<1x512xi1> to vector<1x512xi1>
    %15 = vector.broadcast %14 : vector<1x512xi1> to vector<8x512xi1>
    %16 = arith.select %15, %8, %9 : vector<8x512xi1>, vector<8x512xf32>
    %17 = arith.addf %7, %16 : vector<8x512xf32>
    %cst = arith.constant dense<0xFF800000> : vector<8xf32>
    %18 = vector.multi_reduction <maximumf>, %17, %cst [1] : vector<8x512xf32> to vector<8xf32>
    %19 = vector.shape_cast %18 : vector<8xf32> to vector<8x1xf32>
    %cst_6 = arith.constant 0.000000e+00 : f32
    %20 = vector.broadcast %cst_6 : f32 to vector<8x512xf32>
    %21 = arith.cmpf ogt, %17, %20 : vector<8x512xf32>
    %cst_7 = arith.constant 1.000000e+00 : f32
    %22 = vector.broadcast %cst_7 : f32 to vector<8x512xf32>
    %23 = arith.select %21, %17, %22 : vector<8x512xi1>, vector<8x512xf32>
    %24 = vector.broadcast %19 : vector<8x1xf32> to vector<8x512xf32>
    %25 = vector.broadcast %1 : vector<1x512xf32> to vector<8x512xf32>
    %26 = arith.mulf %24, %25 : vector<8x512xf32>
    %27 = arith.mulf %23, %26 : vector<8x512xf32>
    %28 = math.rsqrt %27 : vector<8x512xf32>
    %29 = arith.mulf %0, %28 : vector<8x512xf32>
    %cst_8 = arith.constant 0.000000e+00 : f32
    %30 = vector.broadcast %cst_8 : f32 to vector<8x512xf32>
    %31 = arith.cmpf oeq, %17, %30 : vector<8x512xf32>
    %32 = vector.broadcast %6 : vector<1x512xi1> to vector<8x512xi1>
    %33 = arith.andi %31, %32 : vector<8x512xi1>
    %34 = arith.select %33, %28, %29 : vector<8x512xi1>, vector<8x512xf32>
    %c0_9 = arith.constant 0 : index
    %c0_10 = arith.constant 0 : index
    %35 = vector.load %arg3[%c0_9, %c0_10] : memref<8x512xf32, #tpu.memory_space<vmem>>, vector<8x512xf32>
    tpu.vector_store %arg3[%c0_9, %c0_10], %34 {strides = array<i32>} : memref<8x512xf32, #tpu.memory_space<vmem>>, vector<8x512xf32>,
    return
  }
  func.func @transform_0(%arg0: i32) -> (i32, i32) {
    %c0_i32 = arith.constant 0 : i32
    %c0_i32_0 = arith.constant 0 : i32
    return %arg0, %c0_i32 : i32, i32
  }
  func.func @transform_1(%arg0: i32) -> (i32, i32) {
    %c0_i32 = arith.constant 0 : i32
    %c0_i32_0 = arith.constant 0 : i32
    %c0_i32_1 = arith.constant 0 : i32
    return %c0_i32, %c0_i32_0 : i32, i32
  }
  func.func @transform_2(%arg0: i32) -> (i32, i32) {
    %c0_i32 = arith.constant 0 : i32
    %c0_i32_0 = arith.constant 0 : i32
    return %arg0, %c0_i32 : i32, i32
  }
}

</mosaic_0001>

<llo_original>
// kernel: tpu_custom_call.1
$region0: #{tpu_custom_call.1}
  #allocation0 [shape = 'u32[]', space=smem, size = 0x4, offset = 0x4, fixed_abs, tag = 'smem constant byte address 0x4 - core index']
  #allocation1 [shape = 'u32[144,128]{1,0:T(1,128)}', space=vmem, size = 0x12000, scoped, tag = 'internal scratch']
  %s0 = inlined_call_operand.hbm [shape: f32[8,512], index: 0, kind: input, shape index: {}]
  %s1 = inlined_call_operand.hbm [shape: f32[1,512], index: 1, kind: input, shape index: {}]
  %s2 = inlined_call_operand.hbm [shape: f32[8,512], index: 2, kind: output, shape index: {}]
  %s3 = sld [smem:[#allocation0]]
  $region26: #{tpu_custom_call.1} parent=0
    _
  %s5 = ssub.s32 1, %s3
  %s6 = scalar_select 0, %s5, %s3
  $region1: #{tpu_custom_call.1} parent=0
    #allocation2 [shape = 'u8[16384]{0}', space=vmem, size = 0x4000, scoped, tag = 'input window, operand 0, single buffered']
    #allocation3 [shape = 's32[1]{0}', space=sflag, size = 0x4, scoped, tag = 'scoped memory for tpu_custom_call.1']
    #allocation4 [shape = 's32[1]{0}', space=sflag, size = 0x4, scoped, tag = 'scoped memory for tpu_custom_call.1']
    #allocation5 [shape = 'u8[2048]{0}', space=vmem, size = 0x800, scoped, tag = 'input window, operand 1, single buffered']
    #allocation6 [shape = 's32[1]{0}', space=sflag, size = 0x4, scoped, tag = 'scoped memory for tpu_custom_call.1']
    #allocation7 [shape = 'u8[16384]{0}', space=vmem, size = 0x4000, scoped, tag = 'output window, operand 0, single buffered']
    %7 = vsyncpa [#allocation3], 0
    %8 = vsyncpa [#allocation6], 0
    %9 = vsyncpa [#allocation4], 0
    // Predicated region
    $region2: #{tpu_custom_call.1} parent=1 // pred_check
      _
    $region3: #{tpu_custom_call.1} parent=1 // pred_check_branch
      %11 = sbr.rel (0) target = $region5
    $region4: #{tpu_custom_call.1} parent=1 // pred_region
      %s13 = ssub.s32 512, 512
      %14 = vsyncadd [#allocation3], %s13
      %s16 = sshll.u32 [#allocation2], 4
      %s17 = int_to_ptr.vmem [resolvable:$true] %s16
      %19 = dma.hbm_to_vmem [thread:$0]  %s0, 512, %s17, [#allocation3]
    $region5: #{tpu_custom_call.1} parent=1 // pred_fallthru
      _
    // Predicated region
    $region6: #{tpu_custom_call.1} parent=1 // pred_check
      _
    $region7: #{tpu_custom_call.1} parent=1 // pred_check_branch
      %21 = sbr.rel (0) target = $region9
    $region8: #{tpu_custom_call.1} parent=1 // pred_region
      %s23 = ssub.s32 64, 64
      %24 = vsyncadd [#allocation6], %s23
      %s26 = sshll.u32 [#allocation5], 4
      %s27 = int_to_ptr.vmem [resolvable:$true] %s26
      %29 = dma.hbm_to_vmem [thread:$0]  %s1, 64, %s27, [#allocation6]
    $region9: #{tpu_custom_call.1} parent=1 // pred_fallthru
      _
    // Predicated region
    $region10: #{tpu_custom_call.1} parent=1 // pred_check
      _
    $region11: #{tpu_custom_call.1} parent=1 // pred_check_branch
      %31 = sbr.rel (0) target = $region13
    $region12: #{tpu_custom_call.1} parent=1 // pred_region
      %32 = dma.done [#allocation3], 512
    $region13: #{tpu_custom_call.1} parent=1 // pred_fallthru
      _
    // Predicated region
    $region14: #{tpu_custom_call.1} parent=1 // pred_check
      _
    $region15: #{tpu_custom_call.1} parent=1 // pred_check_branch
      %34 = sbr.rel (0) target = $region17
    $region16: #{tpu_custom_call.1} parent=1 // pred_region
      %35 = dma.done [#allocation6], 64
    $region17: #{tpu_custom_call.1} parent=1 // pred_fallthru
      _
    %v36 = vld [vmem:[#allocation2] sm:$0xff]
    %v37 = vld [vmem:[#allocation2 + $0x8] sm:$0xff]
    %v38 = vld [vmem:[#allocation2 + $0x10] sm:$0xff]
    %v39 = vld [vmem:[#allocation2 + $0x18] sm:$0xff]
    %v40 = vld [vmem:[#allocation5] sm:$0xf]
    %v41 = vlaneseq
    %v42 = vand.u32 %v41, 127
    %v43 = vadd.s32 %v42, 128
    %v44 = vadd.s32 %v42, 256
    %v45 = vadd.s32 %v42, 384
    %v46 = vand.u32 %v42, 1
    %v47 = vand.u32 %v43, 1
    %v48 = vand.u32 %v44, 1
    %v49 = vand.u32 %v45, 1
    %vm50 = vcmp.eq.s32.totalorder %v46, 0
    %vm51 = vcmp.eq.s32.totalorder %v47, 0
    %vm52 = vcmp.eq.s32.totalorder %v48, 0
    %vm53 = vcmp.eq.s32.totalorder %v49, 0
    %v54 = vmul.f32 %v36, %v36
    %v55 = vmul.f32 %v37, %v37
    %v56 = vmul.f32 %v38, %v38
    %v57 = vmul.f32 %v39, %v39
    %58 = vrot.lane.b32.xlu0 %v54, 1
    %v59 = vpop.permute.xlu0 %58
    %60 = vrot.lane.b32.xlu0 %v55, 1
    %v61 = vpop.permute.xlu0 %60
    %62 = vrot.lane.b32.xlu0 %v56, 1
    %v63 = vpop.permute.xlu0 %62
    %64 = vrot.lane.b32.xlu0 %v57, 1
    %v65 = vpop.permute.xlu0 %64
    %vm66 = vcmp.lt.s32.totalorder %v42, 1
    %v67 = vsel %vm66, %v63, %v65
    %v68 = vsel %vm66, %v61, %v63
    %v69 = vsel %vm66, %v59, %v61
    %v70 = vsel %vm66, %v65, %v59
    %71 = vrot.lane.b32.xlu0 %v54, 127
    %v72 = vpop.permute.xlu0 %71
    %73 = vrot.lane.b32.xlu0 %v55, 127
    %v74 = vpop.permute.xlu0 %73
    %75 = vrot.lane.b32.xlu0 %v56, 127
    %v76 = vpop.permute.xlu0 %75
    %77 = vrot.lane.b32.xlu0 %v57, 127
    %v78 = vpop.permute.xlu0 %77
    %vm79 = vcmp.lt.s32.totalorder %v42, 127
    %v80 = vsel %vm79, %v76, %v78
    %v81 = vsel %vm79, %v74, %v76
    %v82 = vsel %vm79, %v72, %v74
    %v83 = vsel %vm79, %v78, %v72
    %84 = vrot.lane.b32.xlu0 %v42, 1
    %v85 = vpop.permute.xlu0 %84
    %86 = vrot.lane.b32.xlu0 %v43, 1
    %v87 = vpop.permute.xlu0 %86
    %88 = vrot.lane.b32.xlu0 %v44, 1
    %v89 = vpop.permute.xlu0 %88
    %90 = vrot.lane.b32.xlu0 %v45, 1
    %v91 = vpop.permute.xlu0 %90
    %v92 = vsel %vm66, %v89, %v91
    %v93 = vsel %vm66, %v87, %v89
    %v94 = vsel %vm66, %v85, %v87
    %v95 = vsel %vm66, %v91, %v85
    %v96 = vxor.u32 %v42, 1
    %v97 = vxor.u32 %v43, 1
    %v98 = vxor.u32 %v44, 1
    %v99 = vxor.u32 %v45, 1
    %vm100 = vcmp.eq.s32.totalorder %v95, %v96
    %vm101 = vcmp.eq.s32.totalorder %v94, %v97
    %vm102 = vcmp.eq.s32.totalorder %v93, %v98
    %vm103 = vcmp.eq.s32.totalorder %v92, %v99
    %v104 = vsel %vm100, 1, 0
    %v105 = vsel %vm101, 1, 0
    %v106 = vsel %vm102, 1, 0
    %v107 = vsel %vm103, 1, 0
    %v108 = vlaneseq
    %v109 = vshrl.u32 %v108, 7
    %v110 = vsub.s32 0, %v109
    %v111 = vrot.slane %v104, %v110
    %v112 = vlaneseq
    %v113 = vshrl.u32 %v112, 7
    %v114 = vsub.s32 0, %v113
    %v115 = vrot.slane %v105, %v114
    %v116 = vlaneseq
    %v117 = vshrl.u32 %v116, 7
    %v118 = vsub.s32 0, %v117
    %v119 = vrot.slane %v106, %v118
    %v120 = vlaneseq
    %v121 = vshrl.u32 %v120, 7
    %v122 = vsub.s32 0, %v121
    %v123 = vrot.slane %v107, %v122
    %vm124 = vcmp.eq.s32.totalorder %v111, 1
    %vm125 = vcmp.eq.s32.totalorder %v115, 1
    %vm126 = vcmp.eq.s32.totalorder %v119, 1
    %vm127 = vcmp.eq.s32.totalorder %v123, 1
    %v128 = vsel %vm124, %v70, %v82
    %v129 = vsel %vm125, %v69, %v81
    %v130 = vsel %vm126, %v68, %v80
    %v131 = vsel %vm127, %v67, %v83
    %v132 = vadd.f32 %v54, %v128
    %v133 = vadd.f32 %v55, %v129
    %v134 = vadd.f32 %v56, %v130
    %v135 = vadd.f32 %v57, %v131
    %v136 = vmax.f32 %v132, %v133
    %v137 = vmax.f32 %v134, %v135
    %v138 = vmax.f32 %v136, %v137
    %139 = vmax.xlane.f32.xlu0 %v138
    %v140 = vpop.xlane.xlu0 %139
    %vm141 = vcmp.gt.f32.partialorder %v132, 0.0
    %vm142 = vcmp.gt.f32.partialorder %v133, 0.0
    %vm143 = vcmp.gt.f32.partialorder %v134, 0.0
    %vm144 = vcmp.gt.f32.partialorder %v135, 0.0
    %v145 = vsel %vm141, %v132, 1.0
    %v146 = vsel %vm142, %v133, 1.0
    %v147 = vsel %vm143, %v134, 1.0
    %v148 = vsel %vm144, %v135, 1.0
    %v150 = vlaneseq
    %v151 = vshrl.u32 %v150, 7
    %v152 = vsub.s32 0, %v151
    %v153 = vrot.slane %v40, %v152
    %v154 = vlaneseq
    %v155 = vshrl.u32 %v154, 7
    %v156 = vsub.s32 1, %v155
    %v157 = vrot.slane %v40, %v156
    %v158 = vlaneseq
    %v159 = vshrl.u32 %v158, 7
    %v160 = vsub.s32 2, %v159
    %v161 = vrot.slane %v40, %v160
    %v162 = vlaneseq
    %v163 = vshrl.u32 %v162, 7
    %v164 = vsub.s32 3, %v163
    %v165 = vrot.slane %v40, %v164
    %v170 = vmul.f32 %v140, %v153
    %v171 = vmul.f32 %v140, %v157
    %v172 = vmul.f32 %v140, %v161
    %v173 = vmul.f32 %v140, %v165
    %v174 = vmul.f32 %v145, %v170
    %v175 = vmul.f32 %v146, %v171
    %v176 = vmul.f32 %v147, %v172
    %v177 = vmul.f32 %v148, %v173
    %v178 = vrsqrt.pop %v174
    %v179 = vrsqrt.pop %v175
    %v180 = vrsqrt.pop %v176
    %v181 = vrsqrt.pop %v177
    %v182 = vmul.f32 %v36, %v178
    %v183 = vmul.f32 %v37, %v179
    %v184 = vmul.f32 %v38, %v180
    %v185 = vmul.f32 %v39, %v181
    %vm186 = vcmp.eq.f32.partialorder %v132, 0.0
    %vm187 = vcmp.eq.f32.partialorder %v133, 0.0
    %vm188 = vcmp.eq.f32.partialorder %v134, 0.0
    %vm189 = vcmp.eq.f32.partialorder %v135, 0.0
    %v190 = vsel %vm50, 1, 0
    %v191 = vsel %vm51, 1, 0
    %v192 = vsel %vm52, 1, 0
    %v193 = vsel %vm53, 1, 0
    %vm194 = vcmp.eq.s32.totalorder %v190, 1
    %vm195 = vcmp.eq.s32.totalorder %v191, 1
    %vm196 = vcmp.eq.s32.totalorder %v192, 1
    %vm197 = vcmp.eq.s32.totalorder %v193, 1
    %vm198 = vmand %vm186, %vm194
    %vm199 = vmand %vm187, %vm195
    %vm200 = vmand %vm188, %vm196
    %vm201 = vmand %vm189, %vm197
    %v202 = vsel %vm198, %v178, %v182
    %v203 = vsel %vm199, %v179, %v183
    %v204 = vsel %vm200, %v180, %v184
    %v205 = vsel %vm201, %v181, %v185
    %206 = vst [vmem:[#allocation7] sm:$0xff] %v202
    %207 = vst [vmem:[#allocation7 + $0x8] sm:$0xff] %v203
    %208 = vst [vmem:[#allocation7 + $0x10] sm:$0xff] %v204
    %209 = vst [vmem:[#allocation7 + $0x18] sm:$0xff] %v205
    // Predicated region
    $region18: #{tpu_custom_call.1} parent=1 // pred_check
      _
    $region19: #{tpu_custom_call.1} parent=1 // pred_check_branch
      %211 = sbr.rel (0) target = $region21
    $region20: #{tpu_custom_call.1} parent=1 // pred_region
      %s213 = ssub.s32 512, 512
      %214 = vsyncadd [#allocation4], %s213
      %s216 = sshll.u32 [#allocation7], 4
      %s217 = int_to_ptr.vmem [resolvable:$true] %s216
      %219 = dma.vmem_to_hbm [thread:$0]  %s217, 512, %s2, [#allocation4]
    $region21: #{tpu_custom_call.1} parent=1 // pred_fallthru
      _
    // Predicated region
    $region22: #{tpu_custom_call.1} parent=1 // pred_check
      _
    $region23: #{tpu_custom_call.1} parent=1 // pred_check_branch
      %221 = sbr.rel (0) target = $region25
    $region24: #{tpu_custom_call.1} parent=1 // pred_region
      %222 = dma.done [#allocation4], 512
    $region25: #{tpu_custom_call.1} parent=1 // pred_fallthru
      _
    %223 = vsyncpa [#allocation3], 1
    %224 = vsyncpa [#allocation6], 1
    %225 = vsyncpa [#allocation4], 1

</llo_original>
